<compile_context>
chip_gen: v5e
topology: v5e:2x2
jax: 0.10.0
libtpu: 0.0.40
codegen_flags: <defaults>
</compile_context>

<pallas_src>
import math

import jax
import jax.numpy as jnp
import numpy as np
from jax.experimental import pallas as pl
from jax.experimental.pallas import tpu as pltpu

H_HIDDEN = 50   # matches `h = 50` in the module
GP = 128        # per-gate lane padding -> lane-aligned gate slices at 0/128/256
GW = 3 * GP     # fused gate width [r | z | n]


def _round_up(x, m):
    return -(-x // m) * m


def _make_kernel(in_pad, kw, off_w1, off_w2, off_b):
    """Fused 3-cell GRU kernel; static slab offsets baked in.

    Writes one lane-dense (TB, 384) output block:
      lanes [0:128)   = hidden of l1 layer 0 (padded)
      lanes [128:256) = hidden of l1 layer 1 (padded)
      lanes [256:384) = hidden of l2          (padded)  == out
    """

    def kernel(x_ref, slab_ref, out_ref):
        def cell(a, w_start, w_rows, b_row):
            # One fused MXU dot for all three gates [r | z | n].
            w = slab_ref[pl.ds(w_start, w_rows), :]
            bias = slab_ref[pl.ds(b_row, 1), :]            # [b_r | b_z | b_in]
            b_hn = slab_ref[pl.ds(b_row + 1, 1), :][:, 0:GP]
            g = jnp.dot(a, w, preferred_element_type=jnp.float32) + bias
            r = jax.nn.sigmoid(g[:, 0:GP])
            z = jax.nn.sigmoid(g[:, GP:2 * GP])
            n = jnp.tanh(g[:, 2 * GP:3 * GP] + r * b_hn)
            # h0 == 0  =>  h' = (1 - z) * n + z * h  ==  (1 - z) * n.
            # Padding lanes stay exactly 0: g_pad = 0, b_hn_pad = 0
            #   -> n_pad = tanh(0) = 0 -> h_pad = 0.5 * 0 = 0.
            return (1.0 - z) * n

        x = x_ref[...]
        h_l0 = cell(x, 0, in_pad, off_b + 0)               # l1, layer 0
        h_l1 = cell(h_l0[:, 0:kw], off_w1, kw, off_b + 2)  # l1, layer 1
        h_l2 = cell(h_l1[:, 0:kw], off_w2, kw, off_b + 4)  # l2

        # Lane-aligned, unmasked 128-wide stores into the packed output block.
        out_ref[:, 0:GP] = h_l0
        out_ref[:, GP:2 * GP] = h_l1
        out_ref[:, 2 * GP:3 * GP] = h_l2

    return kernel


def pack_lstmnet_params(layers, input_dim):
    """Packs the 3 GRU layers into a single (P, 384) f32 slab.

    layers[i] = [Wir, Wiz, Win, Whr, Whz, Whn, bir, biz, bin, bhr, bhz, bhn]
    with Wi* pre-transposed to (in_features, hid) and biases shaped (1, hid).
    Wh* are dead parameters here (h0 == 0) and are NOT packed.

    Slab rows (kw = hidden padded to 64 rows; zero padding rows not shipped):
      [0, in_pad)                    : W0 (gate-fused, lane-padded to 128/gate)
      [in_pad, in_pad+kw)            : W1
      [in_pad+kw, in_pad+2*kw)       : W2
      [in_pad+2*kw, in_pad+2*kw+8)   : 6 bias rows (main, b_hn per layer) + 2 pad
    """
    H = layers[0][0].shape[1]
    O = layers[2][0].shape[1]
    in_pad = _round_up(input_dim, 8)
    kw = _round_up(H, 64)                      # 50 -> 64 (lane-slice friendly)

    def w_section(layer, rows, hid):
        sec = np.zeros((rows, GW), np.float32)
        for g, W in enumerate(layer[0:3]):                 # Wir, Wiz, Win
            W = np.asarray(W, np.float32)
            sec[:W.shape[0], g * GP:g * GP + hid] = W
        return sec

    def bias_rows(layer, hid):
        bir, biz, bin_, bhr, bhz, bhn = (np.asarray(b, np.float32)[0]
                                         for b in layer[6:12])
        main = np.zeros((GW,), np.float32)
        main[0:hid] = bir + bhr                            # fold b_hr (h0 == 0)
        main[GP:GP + hid] = biz + bhz                      # fold b_hz
        main[2 * GP:2 * GP + hid] = bin_
        hn = np.zeros((GW,), np.float32)
        hn[0:hid] = bhn                                    # gated by r: separate
        return main, hn

    sections = [w_section(layers[0], in_pad, H),
                w_section(layers[1], kw, H),
                w_section(layers[2], kw, O)]
    bias_block = np.zeros((8, GW), np.float32)
    for i, layer in enumerate(layers):
        hid = H if i < 2 else O
        m, n = bias_rows(layer, hid)
        bias_block[2 * i] = m
        bias_block[2 * i + 1] = n
    slab = np.concatenate(sections + [bias_block], axis=0)
    offsets = dict(in_pad=in_pad, kw=kw, off_w1=in_pad, off_w2=in_pad + kw,
                   off_b=in_pad + 2 * kw, H=H, O=O)
    return jnp.asarray(slab), offsets


def lstmnet_forward(x, slab, offsets, *, tb=512):
    """x: (B, input_dim) f32; slab/offsets from pack_lstmnet_params.

    NOTE: implements the `hidden=None` path of LSTMNet.forward (Normal(0, 0)
    sample == zero initial hidden); passing a nonzero hidden is unsupported.
    """
    B, input_dim = x.shape
    in_pad, kw = offsets["in_pad"], offsets["kw"]
    H, O = offsets["H"], offsets["O"]
    if input_dim != in_pad:
        x = jnp.pad(x, ((0, 0), (0, in_pad - input_dim)))

    # Batch tile: multiple of 8, shrunk for tiny batches, padded batch rows
    # are sliced off at the end.  Per-step VMEM ~= 9 KB/row -> tb=512 is a few
    # MiB, comfortably inside every generation's scoped VMEM default.
    tb_eff = min(_round_up(B, 8), _round_up(tb, 8))
    b_pad = _round_up(B, tb_eff)
    if b_pad != B:
        x = jnp.pad(x, ((0, b_pad - B), (0, 0)))
    grid = (b_pad // tb_eff,)
    p_rows = slab.shape[0]

    kernel = _make_kernel(in_pad, kw, offsets["off_w1"], offsets["off_w2"],
                          offsets["off_b"])
    cost = pl.CostEstimate(
        flops=int(2 * b_pad * (in_pad + 2 * kw) * GW),
        transcendentals=int(9 * GP * b_pad),
        bytes_accessed=int(4 * (slab.size + b_pad * in_pad + b_pad * GW)),
    )
    packed = pl.pallas_call(
        kernel,
        out_shape=jax.ShapeDtypeStruct((b_pad, GW), jnp.float32),
        grid=grid,
        in_specs=[
            pl.BlockSpec((tb_eff, in_pad), lambda i: (i, 0)),   # x tile
            pl.BlockSpec((p_rows, GW), lambda i: (0, 0)),       # slab: resident
        ],
        out_specs=pl.BlockSpec((tb_eff, GW), lambda i: (i, 0)),
        compiler_params=pltpu.CompilerParams(
            dimension_semantics=("parallel",)),
        cost_estimate=cost,
    )(x, slab)

    # Lane-dense kernel output -> module outputs (cheap XLA slices/stack).
    out = packed[:B, 2 * GP:2 * GP + O]                  # f2.squeeze(1)
    h1 = jnp.stack([packed[:B, 0:H], packed[:B, GP:GP + H]], axis=0)
    h2 = out[None]                                       # hidden of l2
    return out, (h1, h2)


# ------------------------- init + pure-JAX reference -------------------------

def init_gru_layer(key, in_dim, hid):
    """PyTorch init U(-1/sqrt(hid), 1/sqrt(hid)); Wi*/Wh* pre-transposed."""
    bound = 1.0 / math.sqrt(hid)
    keys = jax.random.split(key, 12)
    u = lambda k, s: jax.random.uniform(k, s, jnp.float32,
                                        minval=-bound, maxval=bound)
    return [u(keys[0], (in_dim, hid)), u(keys[1], (in_dim, hid)),
            u(keys[2], (in_dim, hid)), u(keys[3], (hid, hid)),
            u(keys[4], (hid, hid)), u(keys[5], (hid, hid)),
            u(keys[6], (1, hid)), u(keys[7], (1, hid)), u(keys[8], (1, hid)),
            u(keys[9], (1, hid)), u(keys[10], (1, hid)), u(keys[11], (1, hid))]


def _gru_cell_ref(x, h, p):
    # Full PyTorch GRU cell (keeps the Wh* terms) to validate the h0==0
    # simplification used by the kernel.
    Wir, Wiz, Win, Whr, Whz, Whn, bir, biz, bin_, bhr, bhz, bhn = p
    r = jax.nn.sigmoid(x @ Wir + bir + h @ Whr + bhr)
    z = jax.nn.sigmoid(x @ Wiz + biz + h @ Whz + bhz)
    n = jnp.tanh(x @ Win + bin_ + r * (h @ Whn + bhn))
    return (1.0 - z) * n + z * h


def lstmnet_forward_ref(x, layers):
    B = x.shape[0]
    H = layers[0][0].shape[1]
    O = layers[2][0].shape[1]
    h_l0 = _gru_cell_ref(x, jnp.zeros((B, H), jnp.float32), layers[0])
    h_l1 = _gru_cell_ref(h_l0, jnp.zeros((B, H), jnp.float32), layers[1])
    h_l2 = _gru_cell_ref(h_l1, jnp.zeros((B, O), jnp.float32), layers[2])
    return h_l2, (jnp.stack([h_l0, h_l1], 0), h_l2[None])


if __name__ == "__main__":
    input_dim, output_dim = 16, 8

    key = jax.random.PRNGKey(0)
    kx, k1, k2, k3 = jax.random.split(key, 4)

    layers = [
        init_gru_layer(k1, input_dim, H_HIDDEN),   # l1, layer 0
        init_gru_layer(k2, H_HIDDEN, H_HIDDEN),    # l1, layer 1
        init_gru_layer(k3, H_HIDDEN, output_dim),  # l2
    ]
    slab, offsets = pack_lstmnet_params(layers, input_dim)

    # B=2: single grid step; B=11: batch padding + multi-step grid (tb=8),
    # exercising the resident-slab pipelining path.
    for B in (2, 11):
        x = jax.random.normal(jax.random.fold_in(kx, B), (B, input_dim),
                              jnp.float32)
        out, (h1, h2) = lstmnet_forward(x, slab, offsets, tb=8)
        jax.block_until_ready((out, h1, h2))

        out_r, (h1_r, h2_r) = lstmnet_forward_ref(x, layers)
        assert out.shape == (B, output_dim)
        assert h1.shape == (2, B, H_HIDDEN)
        assert h2.shape == (1, B, output_dim)
        assert jnp.allclose(out, out_r, atol=1e-5)
        assert jnp.allclose(h1, h1_r, atol=1e-5)
        assert jnp.allclose(h2, h2_r, atol=1e-5)

    print("KERNEL_OK")
</pallas_src>

<mosaic_0001>
module attributes {stable_mosaic.version = 11 : i64} {
  func.func @kernel(%arg0: i32, %arg1: memref<8x16xf32, #tpu.memory_space<vmem>>, %arg2: memref<152x384xf32, #tpu.memory_space<vmem>>, %arg3: memref<8x384xf32, #tpu.memory_space<vmem>>) attributes {dimension_semantics = [#tpu.dimension_semantics<parallel>], iteration_bounds = array<i64: 1>, scalar_prefetch = 0 : i64, scratch_operands = 0 : i64, tpu.core_type = #tpu.core_type<tc>, window_params = [{transform_indices = @transform_0, window_bounds = array<i64: 8, 16>}, {pipeline_mode = #tpu.pipeline_mode<synchronous>, transform_indices = @transform_1, window_bounds = array<i64: 152, 384>}, {transform_indices = @transform_2, window_bounds = array<i64: 8, 384>}]} {
    %c0 = arith.constant 0 : index
    %c0_0 = arith.constant 0 : index
    %0 = vector.load %arg1[%c0, %c0_0] : memref<8x16xf32, #tpu.memory_space<vmem>>, vector<8x16xf32>
    %c0_1 = arith.constant 0 : index
    %c0_2 = arith.constant 0 : index
    %1 = vector.load %arg2[%c0_1, %c0_2] : memref<152x384xf32, #tpu.memory_space<vmem>>, vector<16x384xf32>
    %c144 = arith.constant 144 : index
    %c0_3 = arith.constant 0 : index
    %2 = vector.load %arg2[%c144, %c0_3] : memref<152x384xf32, #tpu.memory_space<vmem>>, vector<1x384xf32>
    %c145 = arith.constant 145 : index
    %c0_4 = arith.constant 0 : index
    %3 = vector.load %arg2[%c145, %c0_4] : memref<152x384xf32, #tpu.memory_space<vmem>>, vector<1x384xf32>
    %4 = vector.extract_strided_slice %3 {offsets = [0, 0], sizes = [1, 128], strides = [1, 1]} : vector<1x384xf32> to vector<1x128xf32>
    %cst = arith.constant dense<0.000000e+00> : vector<8x384xf32>
    %5 = tpu.matmul %0, %1, %cst {dimension_numbers = #tpu.dot_dimension_numbers<[1], [0], [0], [1], [0, 0, 1, 1], [], []>} : vector<8x16xf32>, vector<16x384xf32>, vector<8x384xf32> -> vector<8x384xf32>
    %6 = vector.broadcast %2 : vector<1x384xf32> to vector<8x384xf32>
    %7 = arith.addf %5, %6 : vector<8x384xf32>
    %8 = vector.extract_strided_slice %7 {offsets = [0, 0], sizes = [8, 128], strides = [1, 1]} : vector<8x384xf32> to vector<8x128xf32>
    %9 = arith.negf %8 : vector<8x128xf32>
    %10 = math.exp %9 : vector<8x128xf32>
    %cst_5 = arith.constant 1.000000e+00 : f32
    %11 = vector.broadcast %cst_5 : f32 to vector<8x128xf32>
    %12 = arith.addf %11, %10 : vector<8x128xf32>
    %13 = arith.divf %11, %12 : vector<8x128xf32>
    %14 = vector.extract_strided_slice %7 {offsets = [0, 128], sizes = [8, 128], strides = [1, 1]} : vector<8x384xf32> to vector<8x128xf32>
    %15 = arith.negf %14 : vector<8x128xf32>
    %16 = math.exp %15 : vector<8x128xf32>
    %cst_6 = arith.constant 1.000000e+00 : f32
    %17 = vector.broadcast %cst_6 : f32 to vector<8x128xf32>
    %18 = arith.addf %17, %16 : vector<8x128xf32>
    %19 = arith.divf %17, %18 : vector<8x128xf32>
    %20 = vector.extract_strided_slice %7 {offsets = [0, 256], sizes = [8, 128], strides = [1, 1]} : vector<8x384xf32> to vector<8x128xf32>
    %21 = vector.broadcast %4 : vector<1x128xf32> to vector<8x128xf32>
    %22 = arith.mulf %13, %21 : vector<8x128xf32>
    %23 = arith.addf %20, %22 : vector<8x128xf32>
    %24 = math.tanh %23 : vector<8x128xf32>
    %cst_7 = arith.constant 1.000000e+00 : f32
    %25 = vector.broadcast %cst_7 : f32 to vector<8x128xf32>
    %26 = arith.subf %25, %19 : vector<8x128xf32>
    %27 = arith.mulf %26, %24 : vector<8x128xf32>
    %28 = vector.extract_strided_slice %27 {offsets = [0, 0], sizes = [8, 64], strides = [1, 1]} : vector<8x128xf32> to vector<8x64xf32>
    %c16 = arith.constant 16 : index
    %c0_8 = arith.constant 0 : index
    %29 = vector.load %arg2[%c16, %c0_8] : memref<152x384xf32, #tpu.memory_space<vmem>>, vector<64x384xf32>
    %c146 = arith.constant 146 : index
    %c0_9 = arith.constant 0 : index
    %30 = vector.load %arg2[%c146, %c0_9] : memref<152x384xf32, #tpu.memory_space<vmem>>, vector<1x384xf32>
    %c147 = arith.constant 147 : index
    %c0_10 = arith.constant 0 : index
    %31 = vector.load %arg2[%c147, %c0_10] : memref<152x384xf32, #tpu.memory_space<vmem>>, vector<1x384xf32>
    %32 = vector.extract_strided_slice %31 {offsets = [0, 0], sizes = [1, 128], strides = [1, 1]} : vector<1x384xf32> to vector<1x128xf32>
    %cst_11 = arith.constant dense<0.000000e+00> : vector<8x384xf32>
    %33 = tpu.matmul %28, %29, %cst_11 {dimension_numbers = #tpu.dot_dimension_numbers<[1], [0], [0], [1], [0, 0, 1, 1], [], []>} : vector<8x64xf32>, vector<64x384xf32>, vector<8x384xf32> -> vector<8x384xf32>
    %34 = vector.broadcast %30 : vector<1x384xf32> to vector<8x384xf32>
    %35 = arith.addf %33, %34 : vector<8x384xf32>
    %36 = vector.extract_strided_slice %35 {offsets = [0, 0], sizes = [8, 128], strides = [1, 1]} : vector<8x384xf32> to vector<8x128xf32>
    %37 = arith.negf %36 : vector<8x128xf32>
    %38 = math.exp %37 : vector<8x128xf32>
    %cst_12 = arith.constant 1.000000e+00 : f32
    %39 = vector.broadcast %cst_12 : f32 to vector<8x128xf32>
    %40 = arith.addf %39, %38 : vector<8x128xf32>
    %41 = arith.divf %39, %40 : vector<8x128xf32>
    %42 = vector.extract_strided_slice %35 {offsets = [0, 128], sizes = [8, 128], strides = [1, 1]} : vector<8x384xf32> to vector<8x128xf32>
    %43 = arith.negf %42 : vector<8x128xf32>
    %44 = math.exp %43 : vector<8x128xf32>
    %cst_13 = arith.constant 1.000000e+00 : f32
    %45 = vector.broadcast %cst_13 : f32 to vector<8x128xf32>
    %46 = arith.addf %45, %44 : vector<8x128xf32>
    %47 = arith.divf %45, %46 : vector<8x128xf32>
    %48 = vector.extract_strided_slice %35 {offsets = [0, 256], sizes = [8, 128], strides = [1, 1]} : vector<8x384xf32> to vector<8x128xf32>
    %49 = vector.broadcast %32 : vector<1x128xf32> to vector<8x128xf32>
    %50 = arith.mulf %41, %49 : vector<8x128xf32>
    %51 = arith.addf %48, %50 : vector<8x128xf32>
    %52 = math.tanh %51 : vector<8x128xf32>
    %cst_14 = arith.constant 1.000000e+00 : f32
    %53 = vector.broadcast %cst_14 : f32 to vector<8x128xf32>
    %54 = arith.subf %53, %47 : vector<8x128xf32>
    %55 = arith.mulf %54, %52 : vector<8x128xf32>
    %56 = vector.extract_strided_slice %55 {offsets = [0, 0], sizes = [8, 64], strides = [1, 1]} : vector<8x128xf32> to vector<8x64xf32>
    %c80 = arith.constant 80 : index
    %c0_15 = arith.constant 0 : index
    %57 = vector.load %arg2[%c80, %c0_15] : memref<152x384xf32, #tpu.memory_space<vmem>>, vector<64x384xf32>
    %c148 = arith.constant 148 : index
    %c0_16 = arith.constant 0 : index
    %58 = vector.load %arg2[%c148, %c0_16] : memref<152x384xf32, #tpu.memory_space<vmem>>, vector<1x384xf32>
    %c149 = arith.constant 149 : index
    %c0_17 = arith.constant 0 : index
    %59 = vector.load %arg2[%c149, %c0_17] : memref<152x384xf32, #tpu.memory_space<vmem>>, vector<1x384xf32>
    %60 = vector.extract_strided_slice %59 {offsets = [0, 0], sizes = [1, 128], strides = [1, 1]} : vector<1x384xf32> to vector<1x128xf32>
    %cst_18 = arith.constant dense<0.000000e+00> : vector<8x384xf32>
    %61 = tpu.matmul %56, %57, %cst_18 {dimension_numbers = #tpu.dot_dimension_numbers<[1], [0], [0], [1], [0, 0, 1, 1], [], []>} : vector<8x64xf32>, vector<64x384xf32>, vector<8x384xf32> -> vector<8x384xf32>
    %62 = vector.broadcast %58 : vector<1x384xf32> to vector<8x384xf32>
    %63 = arith.addf %61, %62 : vector<8x384xf32>
    %64 = vector.extract_strided_slice %63 {offsets = [0, 0], sizes = [8, 128], strides = [1, 1]} : vector<8x384xf32> to vector<8x128xf32>
    %65 = arith.negf %64 : vector<8x128xf32>
    %66 = math.exp %65 : vector<8x128xf32>
    %cst_19 = arith.constant 1.000000e+00 : f32
    %67 = vector.broadcast %cst_19 : f32 to vector<8x128xf32>
    %68 = arith.addf %67, %66 : vector<8x128xf32>
    %69 = arith.divf %67, %68 : vector<8x128xf32>
    %70 = vector.extract_strided_slice %63 {offsets = [0, 128], sizes = [8, 128], strides = [1, 1]} : vector<8x384xf32> to vector<8x128xf32>
    %71 = arith.negf %70 : vector<8x128xf32>
    %72 = math.exp %71 : vector<8x128xf32>
    %cst_20 = arith.constant 1.000000e+00 : f32
    %73 = vector.broadcast %cst_20 : f32 to vector<8x128xf32>
    %74 = arith.addf %73, %72 : vector<8x128xf32>
    %75 = arith.divf %73, %74 : vector<8x128xf32>
    %76 = vector.extract_strided_slice %63 {offsets = [0, 256], sizes = [8, 128], strides = [1, 1]} : vector<8x384xf32> to vector<8x128xf32>
    %77 = vector.broadcast %60 : vector<1x128xf32> to vector<8x128xf32>
    %78 = arith.mulf %69, %77 : vector<8x128xf32>
    %79 = arith.addf %76, %78 : vector<8x128xf32>
    %80 = math.tanh %79 : vector<8x128xf32>
    %cst_21 = arith.constant 1.000000e+00 : f32
    %81 = vector.broadcast %cst_21 : f32 to vector<8x128xf32>
    %82 = arith.subf %81, %75 : vector<8x128xf32>
    %83 = arith.mulf %82, %80 : vector<8x128xf32>
    %c0_22 = arith.constant 0 : index
    %c0_23 = arith.constant 0 : index
    %84 = vector.load %arg3[%c0_22, %c0_23] : memref<8x384xf32, #tpu.memory_space<vmem>>, vector<8x128xf32>
    tpu.vector_store %arg3[%c0_22, %c0_23], %27 {strides = array<i32>} : memref<8x384xf32, #tpu.memory_space<vmem>>, vector<8x128xf32>,
    %c0_24 = arith.constant 0 : index
    %c128 = arith.constant 128 : index
    %85 = vector.load %arg3[%c0_24, %c128] : memref<8x384xf32, #tpu.memory_space<vmem>>, vector<8x128xf32>
    tpu.vector_store %arg3[%c0_24, %c128], %55 {strides = array<i32>} : memref<8x384xf32, #tpu.memory_space<vmem>>, vector<8x128xf32>,
    %c0_25 = arith.constant 0 : index
    %c256 = arith.constant 256 : index
    %86 = vector.load %arg3[%c0_25, %c256] : memref<8x384xf32, #tpu.memory_space<vmem>>, vector<8x128xf32>
    tpu.vector_store %arg3[%c0_25, %c256], %83 {strides = array<i32>} : memref<8x384xf32, #tpu.memory_space<vmem>>, vector<8x128xf32>,
    return
  }
  func.func @transform_0(%arg0: i32) -> (i32, i32) {
    %c0_i32 = arith.constant 0 : i32
    %c0_i32_0 = arith.constant 0 : i32
    return %arg0, %c0_i32 : i32, i32
  }
  func.func @transform_1(%arg0: i32) -> (i32, i32) {
    %c0_i32 = arith.constant 0 : i32
    %c0_i32_0 = arith.constant 0 : i32
    %c0_i32_1 = arith.constant 0 : i32
    return %c0_i32, %c0_i32_0 : i32, i32
  }
  func.func @transform_2(%arg0: i32) -> (i32, i32) {
    %c0_i32 = arith.constant 0 : i32
    %c0_i32_0 = arith.constant 0 : i32
    return %arg0, %c0_i32 : i32, i32
  }
}

</mosaic_0001>

<llo_original>
// kernel: tpu_custom_call.1
$region0: #{tpu_custom_call.1}
  #allocation0 [shape = 'u32[]', space=smem, size = 0x4, offset = 0x4, fixed_abs, tag = 'smem constant byte address 0x4 - core index']
  #allocation1 [shape = 'u32[72,128]{1,0:T(1,128)}', space=vmem, size = 0x9000, scoped, tag = 'internal scratch']
  %s0 = inlined_call_operand.hbm [shape: f32[8,16], index: 0, kind: input, shape index: {}]
  %s1 = inlined_call_operand.hbm [shape: f32[152,384], index: 1, kind: input, shape index: {}]
  %s2 = inlined_call_operand.hbm [shape: f32[8,384], index: 2, kind: output, shape index: {}]
  %s3 = sld [smem:[#allocation0]]
  $region26: #{tpu_custom_call.1} parent=0
    _
  %s5 = ssub.s32 1, %s3
  %s6 = scalar_select 0, %s5, %s3
  $region1: #{tpu_custom_call.1} parent=0
    #allocation2 [shape = 'u8[4096]{0}', space=vmem, size = 0x1000, scoped, tag = 'input window, operand 0, single buffered']
    #allocation3 [shape = 's32[1]{0}', space=sflag, size = 0x4, scoped, tag = 'scoped memory for tpu_custom_call.1']
    #allocation4 [shape = 's32[1]{0}', space=sflag, size = 0x4, scoped, tag = 'scoped memory for tpu_custom_call.1']
    #allocation5 [shape = 'u8[233472]{0}', space=vmem, size = 0x39000, scoped, tag = 'input window, operand 1, single buffered']
    #allocation6 [shape = 's32[1]{0}', space=sflag, size = 0x4, scoped, tag = 'scoped memory for tpu_custom_call.1']
    #allocation7 [shape = 'u8[12288]{0}', space=vmem, size = 0x3000, scoped, tag = 'output window, operand 0, single buffered']
    %7 = vsyncpa [#allocation3], 0
    %8 = vsyncpa [#allocation6], 0
    %9 = vsyncpa [#allocation4], 0
    // Predicated region
    $region2: #{tpu_custom_call.1} parent=1 // pred_check
      _
    $region3: #{tpu_custom_call.1} parent=1 // pred_check_branch
      %11 = sbr.rel (0) target = $region5
    $region4: #{tpu_custom_call.1} parent=1 // pred_region
      %13 = vsyncadd [#allocation3], 0
      %s15 = sshll.u32 %s0, 4
      %s16 = int_to_ptr.hbm [resolvable:$true] %s15
      %s17 = sshll.u32 [#allocation2], 4
      %s18 = int_to_ptr.vmem [resolvable:$true] %s17
      %20 = dma.hbm_to_vmem [thread:$0]  %s16, 128, %s18, [#allocation3]
    $region5: #{tpu_custom_call.1} parent=1 // pred_fallthru
      _
    // Predicated region
    $region6: #{tpu_custom_call.1} parent=1 // pred_check
      _
    $region7: #{tpu_custom_call.1} parent=1 // pred_check_branch
      %22 = sbr.rel (0) target = $region9
    $region8: #{tpu_custom_call.1} parent=1 // pred_region
      %24 = vsyncadd [#allocation6], 0
      %s25 = sshll.u32 %s1, 4
      %s26 = int_to_ptr.hbm [resolvable:$true] %s25
      %s27 = sshll.u32 [#allocation5], 4
      %s28 = int_to_ptr.vmem [resolvable:$true] %s27
      %33 = dma.hbm_to_vmem [thread:$0]  %s26, 7296, %s28, [#allocation6], 384, 384, 24
    $region9: #{tpu_custom_call.1} parent=1 // pred_fallthru
      _
    // Predicated region
    $region10: #{tpu_custom_call.1} parent=1 // pred_check
      _
    $region11: #{tpu_custom_call.1} parent=1 // pred_check_branch
      %35 = sbr.rel (0) target = $region13
    $region12: #{tpu_custom_call.1} parent=1 // pred_region
      %37 = dma.done [#allocation3], 128
    $region13: #{tpu_custom_call.1} parent=1 // pred_fallthru
      _
    // Predicated region
    $region14: #{tpu_custom_call.1} parent=1 // pred_check
      _
    $region15: #{tpu_custom_call.1} parent=1 // pred_check_branch
      %39 = sbr.rel (0) target = $region17
    $region16: #{tpu_custom_call.1} parent=1 // pred_region
      %41 = dma.done [#allocation6], 7296
    $region17: #{tpu_custom_call.1} parent=1 // pred_fallthru
      _
    %v42 = vld [vmem:[#allocation2] sm:$0xff]
    %v43 = vld [vmem:[#allocation5] sm:$0xff]
    %v44 = vld [vmem:[#allocation5 + $0x8] sm:$0xff]
    %v45 = vld [vmem:[#allocation5 + $0x10] sm:$0xff]
    %v46 = vld [vmem:[#allocation5 + $0x18] sm:$0xff]
    %v47 = vld [vmem:[#allocation5 + $0x20] sm:$0xff]
    %v48 = vld [vmem:[#allocation5 + $0x28] sm:$0xff]
    %s49 = scalar_lea.vmem [#allocation5], 432
    %v50 = vld [vmem:[%s49] ss:$8 sm:$0x7]
    %s51 = scalar_lea.vmem [#allocation5], 433
    %v52 = vld [vmem:[%s51] ss:$8 sm:$0x7]
    %v54 = vperm.slane %v50, 0
    %v55 = vperm.slane %v50, 1
    %v56 = vperm.slane %v50, 2
    %vm60 = vcmask 130048
    %v62 = vsel %vm60, %v42, 0
    %64 = vmatpush.msra.mxu0 0.0
    %65 = vmatpush.msra.mxu0 0.0
    %66 = vmatpush.msra.mxu0 0.0
    %67 = vmatpush.msra.mxu0 0.0
    %68 = vmatpush.msra.mxu0 0.0
    %69 = vmatpush.msra.mxu0 0.0
    %70 = vmatpush.msra.mxu0 0.0
    %71 = vmatpush.msra.mxu0 0.0
    %72 = vmatpush.msra.mxu0 0.0
    %73 = vmatpush.msra.mxu0 0.0
    %74 = vmatpush.msra.mxu0 0.0
    %75 = vmatpush.msra.mxu0 0.0
    %76 = vmatpush.msra.mxu0 0.0
    %77 = vmatpush.msra.mxu0 0.0
    %78 = vmatpush.msra.mxu0 %v46
    %79 = vmatpush.msra.mxu0 %v43
    %80 = vmatmul.f32.gmra.mxu0 %v62
    %v81 = vpop.f32.mrf.mxu0
    %v82 = vadd.f32 %v54, %v81
    %83 = vdwg.mxu0
    %84 = vmatpush.msra.mxu0 0.0
    %85 = vmatpush.msra.mxu0 0.0
    %86 = vmatpush.msra.mxu0 0.0
    %87 = vmatpush.msra.mxu0 0.0
    %88 = vmatpush.msra.mxu0 0.0
    %89 = vmatpush.msra.mxu0 0.0
    %90 = vmatpush.msra.mxu0 0.0
    %91 = vmatpush.msra.mxu0 0.0
    %92 = vmatpush.msra.mxu0 0.0
    %93 = vmatpush.msra.mxu0 0.0
    %94 = vmatpush.msra.mxu0 0.0
    %95 = vmatpush.msra.mxu0 0.0
    %96 = vmatpush.msra.mxu0 0.0
    %97 = vmatpush.msra.mxu0 0.0
    %98 = vmatpush.msra.mxu0 %v47
    %99 = vmatpush.msra.mxu0 %v44
    %100 = vmatmul.f32.gmra.mxu0 %v62
    %v101 = vpop.f32.mrf.mxu0
    %v102 = vadd.f32 %v55, %v101
    %103 = vdwg.mxu0
    %104 = vmatpush.msra.mxu0 0.0
    %105 = vmatpush.msra.mxu0 0.0
    %106 = vmatpush.msra.mxu0 0.0
    %107 = vmatpush.msra.mxu0 0.0
    %108 = vmatpush.msra.mxu0 0.0
    %109 = vmatpush.msra.mxu0 0.0
    %110 = vmatpush.msra.mxu0 0.0
    %111 = vmatpush.msra.mxu0 0.0
    %112 = vmatpush.msra.mxu0 0.0
    %113 = vmatpush.msra.mxu0 0.0
    %114 = vmatpush.msra.mxu0 0.0
    %115 = vmatpush.msra.mxu0 0.0
    %116 = vmatpush.msra.mxu0 0.0
    %117 = vmatpush.msra.mxu0 0.0
    %118 = vmatpush.msra.mxu0 %v48
    %119 = vmatpush.msra.mxu0 %v45
    %120 = vmatmul.f32.gmra.mxu0 %v62
    %v121 = vpop.f32.mrf.mxu0
    %v122 = vadd.f32 %v56, %v121
    %123 = vdwg.mxu0
    %v124 = vxor.u32 %v82, 2147483648
    %v125 = vmul.f32 %v124, 1.442695
    %v126 = vpow.pop %v125
    %v127 = vadd.f32 %v126, 1.0
    %v128 = vrcp.pop %v127
    %v129 = vmul.f32 %v127, %v128
    %v130 = vsub.f32 1.0, %v129
    %v131 = vmul.f32 %v128, %v130
    %v132 = vadd.f32 %v128, %v131
    %vm133 = vweird.f32 %v127
    %vm134 = vweird.f32 %v128
    %vm135 = vmor %vm133, %vm134
    %v136 = vsel %vm135, %v128, %v132
    %v137 = vand.u32 2147483647, %v127
    %vm138 = vcmp.eq.f32.partialorder %v137, 8.507059e+37
    %v139 = vand.u32 %v127, 2147483648
    %v140 = vor.u32 1.1754944e-38, %v139
    %v141 = vsel %vm138, %v140, %v136
    %v142 = vmul.f32 1.0, %v141
    %v143 = vxor.u32 %v102, 2147483648
    %v144 = vmul.f32 %v143, 1.442695
    %v145 = vpow.pop %v144
    %v146 = vadd.f32 %v145, 1.0
    %v147 = vrcp.pop %v146
    %v148 = vmul.f32 %v146, %v147
    %v149 = vsub.f32 1.0, %v148
    %v150 = vmul.f32 %v147, %v149
    %v151 = vadd.f32 %v147, %v150
    %vm152 = vweird.f32 %v146
    %vm153 = vweird.f32 %v147
    %vm154 = vmor %vm152, %vm153
    %v155 = vsel %vm154, %v147, %v151
    %v156 = vand.u32 2147483647, %v146
    %vm157 = vcmp.eq.f32.partialorder %v156, 8.507059e+37
    %v158 = vand.u32 %v146, 2147483648
    %v159 = vor.u32 1.1754944e-38, %v158
    %v160 = vsel %vm157, %v159, %v155
    %v161 = vmul.f32 1.0, %v160
    %v163 = vperm.slane %v52, 0
    %v165 = vmul.f32 %v142, %v163
    %v166 = vadd.f32 %v122, %v165
    %v167 = vtanh.pop %v166
    %v168 = vsub.f32 1.0, %v161
    %v169 = vmul.f32 %v168, %v167
    %v170 = vld [vmem:[#allocation5 + $0x30] sm:$0xff]
    %v171 = vld [vmem:[#allocation5 + $0x38] sm:$0xff]
    %v172 = vld [vmem:[#allocation5 + $0x40] sm:$0xff]
    %v173 = vld [vmem:[#allocation5 + $0x48] sm:$0xff]
    %v174 = vld [vmem:[#allocation5 + $0x50] sm:$0xff]
    %v175 = vld [vmem:[#allocation5 + $0x58] sm:$0xff]
    %v176 = vld [vmem:[#allocation5 + $0x60] sm:$0xff]
    %v177 = vld [vmem:[#allocation5 + $0x68] sm:$0xff]
    %v178 = vld [vmem:[#allocation5 + $0x70] sm:$0xff]
    %v179 = vld [vmem:[#allocation5 + $0x78] sm:$0xff]
    %v180 = vld [vmem:[#allocation5 + $0x80] sm:$0xff]
    %v181 = vld [vmem:[#allocation5 + $0x88] sm:$0xff]
    %v182 = vld [vmem:[#allocation5 + $0x90] sm:$0xff]
    %v183 = vld [vmem:[#allocation5 + $0x98] sm:$0xff]
    %v184 = vld [vmem:[#allocation5 + $0xa0] sm:$0xff]
    %v185 = vld [vmem:[#allocation5 + $0xa8] sm:$0xff]
    %v186 = vld [vmem:[#allocation5 + $0xb0] sm:$0xff]
    %v187 = vld [vmem:[#allocation5 + $0xb8] sm:$0xff]
    %v188 = vld [vmem:[#allocation5 + $0xc0] sm:$0xff]
    %v189 = vld [vmem:[#allocation5 + $0xc8] sm:$0xff]
    %v190 = vld [vmem:[#allocation5 + $0xd0] sm:$0xff]
    %v191 = vld [vmem:[#allocation5 + $0xd8] sm:$0xff]
    %v192 = vld [vmem:[#allocation5 + $0xe0] sm:$0xff]
    %v193 = vld [vmem:[#allocation5 + $0xe8] sm:$0xff]
    %s194 = scalar_lea.vmem [#allocation5], 434
    %v195 = vld [vmem:[%s194] ss:$8 sm:$0x7]
    %s196 = scalar_lea.vmem [#allocation5], 435
    %v197 = vld [vmem:[%s196] ss:$8 sm:$0x7]
    %v199 = vperm.slane %v195, 0
    %v200 = vperm.slane %v195, 1
    %v201 = vperm.slane %v195, 2
    %vm205 = vcmask 523264
    %v207 = vsel %vm205, %v169, 0
    %209 = vmatpush.msra.mxu0 0.0
    %210 = vmatpush.msra.mxu0 0.0
    %211 = vmatpush.msra.mxu0 0.0
    %212 = vmatpush.msra.mxu0 0.0
    %213 = vmatpush.msra.mxu0 0.0
    %214 = vmatpush.msra.mxu0 0.0
    %215 = vmatpush.msra.mxu0 0.0
    %216 = vmatpush.msra.mxu0 0.0
    %217 = vmatpush.msra.mxu0 %v191
    %218 = vmatpush.msra.mxu0 %v188
    %219 = vmatpush.msra.mxu0 %v185
    %220 = vmatpush.msra.mxu0 %v182
    %221 = vmatpush.msra.mxu0 %v179
    %222 = vmatpush.msra.mxu0 %v176
    %223 = vmatpush.msra.mxu0 %v173
    %224 = vmatpush.msra.mxu0 %v170
    %225 = vmatmul.f32.gmra.mxu0 %v207
    %v226 = vpop.f32.mrf.mxu0
    %v227 = vadd.f32 %v199, %v226
    %228 = vdwg.mxu0
    %229 = vmatpush.msra.mxu0 0.0
    %230 = vmatpush.msra.mxu0 0.0
    %231 = vmatpush.msra.mxu0 0.0
    %232 = vmatpush.msra.mxu0 0.0
    %233 = vmatpush.msra.mxu0 0.0
    %234 = vmatpush.msra.mxu0 0.0
    %235 = vmatpush.msra.mxu0 0.0
    %236 = vmatpush.msra.mxu0 0.0
    %237 = vmatpush.msra.mxu0 %v192
    %238 = vmatpush.msra.mxu0 %v189
    %239 = vmatpush.msra.mxu0 %v186
    %240 = vmatpush.msra.mxu0 %v183
    %241 = vmatpush.msra.mxu0 %v180
    %242 = vmatpush.msra.mxu0 %v177
    %243 = vmatpush.msra.mxu0 %v174
    %244 = vmatpush.msra.mxu0 %v171
    %245 = vmatmul.f32.gmra.mxu0 %v207
    %v246 = vpop.f32.mrf.mxu0
    %v247 = vadd.f32 %v200, %v246
    %248 = vdwg.mxu0
    %249 = vmatpush.msra.mxu0 0.0
    %250 = vmatpush.msra.mxu0 0.0
    %251 = vmatpush.msra.mxu0 0.0
    %252 = vmatpush.msra.mxu0 0.0
    %253 = vmatpush.msra.mxu0 0.0
    %254 = vmatpush.msra.mxu0 0.0
    %255 = vmatpush.msra.mxu0 0.0
    %256 = vmatpush.msra.mxu0 0.0
    %257 = vmatpush.msra.mxu0 %v193
    %258 = vmatpush.msra.mxu0 %v190
    %259 = vmatpush.msra.mxu0 %v187
    %260 = vmatpush.msra.mxu0 %v184
    %261 = vmatpush.msra.mxu0 %v181
    %262 = vmatpush.msra.mxu0 %v178
    %263 = vmatpush.msra.mxu0 %v175
    %264 = vmatpush.msra.mxu0 %v172
    %265 = vmatmul.f32.gmra.mxu0 %v207
    %v266 = vpop.f32.mrf.mxu0
    %v267 = vadd.f32 %v201, %v266
    %268 = vdwg.mxu0
    %v269 = vxor.u32 %v227, 2147483648
    %v270 = vmul.f32 %v269, 1.442695
    %v271 = vpow.pop %v270
    %v272 = vadd.f32 %v271, 1.0
    %v273 = vrcp.pop %v272
    %v274 = vmul.f32 %v272, %v273
    %v275 = vsub.f32 1.0, %v274
    %v276 = vmul.f32 %v273, %v275
    %v277 = vadd.f32 %v273, %v276
    %vm278 = vweird.f32 %v272
    %vm279 = vweird.f32 %v273
    %vm280 = vmor %vm278, %vm279
    %v281 = vsel %vm280, %v273, %v277
    %v282 = vand.u32 2147483647, %v272
    %vm283 = vcmp.eq.f32.partialorder %v282, 8.507059e+37
    %v284 = vand.u32 %v272, 2147483648
    %v285 = vor.u32 1.1754944e-38, %v284
    %v286 = vsel %vm283, %v285, %v281
    %v287 = vmul.f32 1.0, %v286
    %v288 = vxor.u32 %v247, 2147483648
    %v289 = vmul.f32 %v288, 1.442695
    %v290 = vpow.pop %v289
    %v291 = vadd.f32 %v290, 1.0
    %v292 = vrcp.pop %v291
    %v293 = vmul.f32 %v291, %v292
    %v294 = vsub.f32 1.0, %v293
    %v295 = vmul.f32 %v292, %v294
    %v296 = vadd.f32 %v292, %v295
    %vm297 = vweird.f32 %v291
    %vm298 = vweird.f32 %v292
    %vm299 = vmor %vm297, %vm298
    %v300 = vsel %vm299, %v292, %v296
    %v301 = vand.u32 2147483647, %v291
    %vm302 = vcmp.eq.f32.partialorder %v301, 8.507059e+37
    %v303 = vand.u32 %v291, 2147483648
    %v304 = vor.u32 1.1754944e-38, %v303
    %v305 = vsel %vm302, %v304, %v300
    %v306 = vmul.f32 1.0, %v305
    %v308 = vperm.slane %v197, 0
    %v310 = vmul.f32 %v287, %v308
    %v311 = vadd.f32 %v267, %v310
    %v312 = vtanh.pop %v311
    %v313 = vsub.f32 1.0, %v306
    %v314 = vmul.f32 %v313, %v312
    %v315 = vld [vmem:[#allocation5 + $0xf0] sm:$0xff]
    %v316 = vld [vmem:[#allocation5 + $0xf8] sm:$0xff]
    %v317 = vld [vmem:[#allocation5 + $0x100] sm:$0xff]
    %v318 = vld [vmem:[#allocation5 + $0x108] sm:$0xff]
    %v319 = vld [vmem:[#allocation5 + $0x110] sm:$0xff]
    %v320 = vld [vmem:[#allocation5 + $0x118] sm:$0xff]
    %v321 = vld [vmem:[#allocation5 + $0x120] sm:$0xff]
    %v322 = vld [vmem:[#allocation5 + $0x128] sm:$0xff]
    %v323 = vld [vmem:[#allocation5 + $0x130] sm:$0xff]
    %v324 = vld [vmem:[#allocation5 + $0x138] sm:$0xff]
    %v325 = vld [vmem:[#allocation5 + $0x140] sm:$0xff]
    %v326 = vld [vmem:[#allocation5 + $0x148] sm:$0xff]
    %v327 = vld [vmem:[#allocation5 + $0x150] sm:$0xff]
    %v328 = vld [vmem:[#allocation5 + $0x158] sm:$0xff]
    %v329 = vld [vmem:[#allocation5 + $0x160] sm:$0xff]
    %v330 = vld [vmem:[#allocation5 + $0x168] sm:$0xff]
    %v331 = vld [vmem:[#allocation5 + $0x170] sm:$0xff]
    %v332 = vld [vmem:[#allocation5 + $0x178] sm:$0xff]
    %v333 = vld [vmem:[#allocation5 + $0x180] sm:$0xff]
    %v334 = vld [vmem:[#allocation5 + $0x188] sm:$0xff]
    %v335 = vld [vmem:[#allocation5 + $0x190] sm:$0xff]
    %v336 = vld [vmem:[#allocation5 + $0x198] sm:$0xff]
    %v337 = vld [vmem:[#allocation5 + $0x1a0] sm:$0xff]
    %v338 = vld [vmem:[#allocation5 + $0x1a8] sm:$0xff]
    %s339 = scalar_lea.vmem [#allocation5], 436
    %v340 = vld [vmem:[%s339] ss:$8 sm:$0x7]
    %s341 = scalar_lea.vmem [#allocation5], 437
    %v342 = vld [vmem:[%s341] ss:$8 sm:$0x7]
    %v344 = vperm.slane %v340, 0
    %v345 = vperm.slane %v340, 1
    %v346 = vperm.slane %v340, 2
    %v351 = vsel %vm205, %v314, 0
    %353 = vmatpush.msra.mxu0 0.0
    %354 = vmatpush.msra.mxu0 0.0
    %355 = vmatpush.msra.mxu0 0.0
    %356 = vmatpush.msra.mxu0 0.0
    %357 = vmatpush.msra.mxu0 0.0
    %358 = vmatpush.msra.mxu0 0.0
    %359 = vmatpush.msra.mxu0 0.0
    %360 = vmatpush.msra.mxu0 0.0
    %361 = vmatpush.msra.mxu0 %v336
    %362 = vmatpush.msra.mxu0 %v333
    %363 = vmatpush.msra.mxu0 %v330
    %364 = vmatpush.msra.mxu0 %v327
    %365 = vmatpush.msra.mxu0 %v324
    %366 = vmatpush.msra.mxu0 %v321
    %367 = vmatpush.msra.mxu0 %v318
    %368 = vmatpush.msra.mxu0 %v315
    %369 = vmatmul.f32.gmra.mxu0 %v351
    %v370 = vpop.f32.mrf.mxu0
    %v371 = vadd.f32 %v344, %v370
    %372 = vdwg.mxu0
    %373 = vmatpush.msra.mxu0 0.0
    %374 = vmatpush.msra.mxu0 0.0
    %375 = vmatpush.msra.mxu0 0.0
    %376 = vmatpush.msra.mxu0 0.0
    %377 = vmatpush.msra.mxu0 0.0
    %378 = vmatpush.msra.mxu0 0.0
    %379 = vmatpush.msra.mxu0 0.0
    %380 = vmatpush.msra.mxu0 0.0
    %381 = vmatpush.msra.mxu0 %v337
    %382 = vmatpush.msra.mxu0 %v334
    %383 = vmatpush.msra.mxu0 %v331
    %384 = vmatpush.msra.mxu0 %v328
    %385 = vmatpush.msra.mxu0 %v325
    %386 = vmatpush.msra.mxu0 %v322
    %387 = vmatpush.msra.mxu0 %v319
    %388 = vmatpush.msra.mxu0 %v316
    %389 = vmatmul.f32.gmra.mxu0 %v351
    %v390 = vpop.f32.mrf.mxu0
    %v391 = vadd.f32 %v345, %v390
    %392 = vdwg.mxu0
    %393 = vmatpush.msra.mxu0 0.0
    %394 = vmatpush.msra.mxu0 0.0
    %395 = vmatpush.msra.mxu0 0.0
    %396 = vmatpush.msra.mxu0 0.0
    %397 = vmatpush.msra.mxu0 0.0
    %398 = vmatpush.msra.mxu0 0.0
    %399 = vmatpush.msra.mxu0 0.0
    %400 = vmatpush.msra.mxu0 0.0
    %401 = vmatpush.msra.mxu0 %v338
    %402 = vmatpush.msra.mxu0 %v335
    %403 = vmatpush.msra.mxu0 %v332
    %404 = vmatpush.msra.mxu0 %v329
    %405 = vmatpush.msra.mxu0 %v326
    %406 = vmatpush.msra.mxu0 %v323
    %407 = vmatpush.msra.mxu0 %v320
    %408 = vmatpush.msra.mxu0 %v317
    %409 = vmatmul.f32.gmra.mxu0 %v351
    %v410 = vpop.f32.mrf.mxu0
    %v411 = vadd.f32 %v346, %v410
    %412 = vdwg.mxu0
    %v413 = vxor.u32 %v371, 2147483648
    %v414 = vmul.f32 %v413, 1.442695
    %v415 = vpow.pop %v414
    %v416 = vadd.f32 %v415, 1.0
    %v417 = vrcp.pop %v416
    %v418 = vmul.f32 %v416, %v417
    %v419 = vsub.f32 1.0, %v418
    %v420 = vmul.f32 %v417, %v419
    %v421 = vadd.f32 %v417, %v420
    %vm422 = vweird.f32 %v416
    %vm423 = vweird.f32 %v417
    %vm424 = vmor %vm422, %vm423
    %v425 = vsel %vm424, %v417, %v421
    %v426 = vand.u32 2147483647, %v416
    %vm427 = vcmp.eq.f32.partialorder %v426, 8.507059e+37
    %v428 = vand.u32 %v416, 2147483648
    %v429 = vor.u32 1.1754944e-38, %v428
    %v430 = vsel %vm427, %v429, %v425
    %v431 = vmul.f32 1.0, %v430
    %v432 = vxor.u32 %v391, 2147483648
    %v433 = vmul.f32 %v432, 1.442695
    %v434 = vpow.pop %v433
    %v435 = vadd.f32 %v434, 1.0
    %v436 = vrcp.pop %v435
    %v437 = vmul.f32 %v435, %v436
    %v438 = vsub.f32 1.0, %v437
    %v439 = vmul.f32 %v436, %v438
    %v440 = vadd.f32 %v436, %v439
    %vm441 = vweird.f32 %v435
    %vm442 = vweird.f32 %v436
    %vm443 = vmor %vm441, %vm442
    %v444 = vsel %vm443, %v436, %v440
    %v445 = vand.u32 2147483647, %v435
    %vm446 = vcmp.eq.f32.partialorder %v445, 8.507059e+37
    %v447 = vand.u32 %v435, 2147483648
    %v448 = vor.u32 1.1754944e-38, %v447
    %v449 = vsel %vm446, %v448, %v444
    %v450 = vmul.f32 1.0, %v449
    %v452 = vperm.slane %v342, 0
    %v454 = vmul.f32 %v431, %v452
    %v455 = vadd.f32 %v411, %v454
    %v456 = vtanh.pop %v455
    %v457 = vsub.f32 1.0, %v450
    %v458 = vmul.f32 %v457, %v456
    %459 = vst [vmem:[#allocation7] sm:$0xff] %v169
    %460 = vst [vmem:[#allocation7 + $0x8] sm:$0xff] %v314
    %461 = vst [vmem:[#allocation7 + $0x10] sm:$0xff] %v458
    // Predicated region
    $region18: #{tpu_custom_call.1} parent=1 // pred_check
      _
    $region19: #{tpu_custom_call.1} parent=1 // pred_check_branch
      %463 = sbr.rel (0) target = $region21
    $region20: #{tpu_custom_call.1} parent=1 // pred_region
      %465 = vsyncadd [#allocation4], 0
      %s467 = sshll.u32 [#allocation7], 4
      %s468 = int_to_ptr.vmem [resolvable:$true] %s467
      %s469 = sshll.u32 %s2, 4
      %s470 = int_to_ptr.hbm [resolvable:$true] %s469
      %472 = dma.vmem_to_hbm [thread:$0]  %s468, 384, %s470, [#allocation4]
    $region21: #{tpu_custom_call.1} parent=1 // pred_fallthru
      _
    // Predicated region
    $region22: #{tpu_custom_call.1} parent=1 // pred_check
      _
    $region23: #{tpu_custom_call.1} parent=1 // pred_check_branch
      %474 = sbr.rel (0) target = $region25
    $region24: #{tpu_custom_call.1} parent=1 // pred_region
      %476 = dma.done [#allocation4], 384
    $region25: #{tpu_custom_call.1} parent=1 // pred_fallthru
      _
    %477 = vsyncpa [#allocation3], 1
    %478 = vsyncpa [#allocation6], 1
    %479 = vsyncpa [#allocation4], 1

</llo_original>
